<compile_context>
chip_gen: v5e
topology: v5e:2x2
jax: 0.10.0
libtpu: 0.0.40
codegen_flags: <defaults>
</compile_context>

<pallas_src>
import jax
import jax.numpy as jnp
from jax.experimental import pallas as pl
from jax.experimental.pallas import tpu as pltpu
from jax.scipy.special import gammaln, digamma

IN_DIM = 6   # self.in_dim
R_DIM = 6    # self.r_dim
ROWS = 8     # sublane-aligned row padding for f32 (only row 0 is real)
LANES = 128  # lane-aligned feature padding


def _round_up(x, m):
    return ((x + m - 1) // m) * m


def _make_mlp_kernel(num_linear):
    """Softplus(W_n(...ReLU(W_1 [x,1])...)) with bias folded into each W."""

    def kernel(*refs):
        x_ref = refs[0]
        out_ref = refs[-1]
        h = x_ref[...]                         # f32 (8, K0), ones lane at col in_dim
        for li in range(num_linear):
            w = refs[1 + li][...]              # f32 (K_l, N_l), bias row at K index fan_in
            acc = jnp.dot(h, w, preferred_element_type=jnp.float32)
            if li < num_linear - 1:
                # ReLU — must stay ReLU: the augmented weight regenerated the
                # "ones" lane at column dims[li+1] and ReLU(1) == 1 preserves it.
                h = jnp.maximum(acc, 0.0)
            else:
                # nn.Softplus (beta=1, threshold=20).
                h = jnp.where(acc > 20.0, acc,
                              jnp.log1p(jnp.exp(jnp.minimum(acc, 20.0))))
        out_ref[...] = h                       # f32 (8, N_last)

    return kernel


def _dirichlet_kl(alpha_q, alpha_p):
    """KL(Dirichlet(alpha_q) || Dirichlet(alpha_p)), scalar."""
    sq = jnp.sum(alpha_q)
    sp = jnp.sum(alpha_p)
    return (
        gammaln(sq)
        - jnp.sum(gammaln(alpha_q))
        - gammaln(sp)
        + jnp.sum(gammaln(alpha_p))
        + jnp.sum((alpha_q - alpha_p) * (digamma(alpha_q) - digamma(sq)))
    )


def _vmem_capacity_bytes():
    """Physical VMEM per core; conservative fallback (v7x = 64 MiB)."""
    try:
        return int(pltpu.get_tpu_info().vmem_capacity_bytes)
    except Exception:
        return 64 << 20


class GTRSubRateIndDeepDirEncoderPallas:
    def __init__(self, h_dim, n_layers=2, rates_prior_hp=None, key=None):
        self.h_dim = h_dim
        self.n_layers = n_layers
        self.in_dim = IN_DIM
        self.r_dim = R_DIM
        if rates_prior_hp is None:
            rates_prior_hp = jnp.ones((R_DIM,), jnp.float32)
        self.pr = jnp.asarray(rates_prior_hp, jnp.float32)
        if key is None:
            key = jax.random.PRNGKey(0)

        # torch builds at least 2 Linear layers (first + final) regardless of n_layers.
        self.num_linear = max(n_layers, 2)
        dims = [self.in_dim] + [self.h_dim] * (self.num_linear - 1) + [self.r_dim]

        # nn.Linear default init: U(-1/sqrt(fan_in), 1/sqrt(fan_in)) for W and b.
        ws, bs = [], []
        for li in range(self.num_linear):
            fan_in, fan_out = dims[li], dims[li + 1]
            key, kw, kb = jax.random.split(key, 3)
            bound = 1.0 / float(fan_in) ** 0.5
            ws.append(jax.random.uniform(kw, (fan_out, fan_in), jnp.float32, -bound, bound))
            bs.append(jax.random.uniform(kb, (fan_out,), jnp.float32, -bound, bound))

        # self.noise = torch.zeros(in_dim).uniform_()
        key, kn = jax.random.split(key)
        self.noise = jax.random.uniform(kn, (self.in_dim,), jnp.float32)

        # --- TPU layout: per-layer rectangular padding + bias folding ----------
        # Layer l input width K_l includes one extra "ones" lane; hidden output
        # width N_l equals the next layer's K so the ones lane is carried forward.
        k_pads = [_round_up(dims[l] + 1, LANES) for l in range(self.num_linear)]
        n_pads = k_pads[1:] + [_round_up(self.r_dim, LANES)]
        self._out_lanes = n_pads[-1]

        w_pads = []
        for l in range(self.num_linear):
            fan_in, fan_out = dims[l], dims[l + 1]
            wa = jnp.zeros((k_pads[l], n_pads[l]), jnp.float32)
            wa = wa.at[:fan_in, :fan_out].set(ws[l].T)        # (in, out) layout
            wa = wa.at[fan_in, :fan_out].set(bs[l])           # bias row hit by the ones lane
            if l < self.num_linear - 1:
                wa = wa.at[fan_in, fan_out].set(1.0)          # regenerate ones lane (survives ReLU)
            w_pads.append(wa)                                  # keep f32: full fidelity, DMA cost is noise
        self._w_pads = w_pads

        x = jnp.zeros((ROWS, k_pads[0]), jnp.float32)
        x = x.at[0, : self.in_dim].set(self.noise)
        x = x.at[:, self.in_dim].set(1.0)                     # ones lane in EVERY row
        self._x_pad = x

        # VMEM budget: everything resident once (no grid => no double-buffering).
        # Device-aware cap: never request more than 3/4 of physical VMEM
        # (v7x has only 64 MiB) and no artificial floor (v5e headroom).
        total_bytes = (self._x_pad.size * 4
                       + sum(int(w.size) * 4 for w in w_pads)
                       + ROWS * self._out_lanes * 4)
        vmem_cap = _vmem_capacity_bytes()
        vmem_limit = min(int(total_bytes * 2) + (4 << 20), (vmem_cap * 3) // 4)

        kern = _make_mlp_kernel(self.num_linear)
        vmem_spec = pl.BlockSpec(memory_space=pltpu.MemorySpace.VMEM)
        self._mlp = pl.pallas_call(
            kern,
            out_shape=jax.ShapeDtypeStruct((ROWS, self._out_lanes), jnp.float32),
            in_specs=[vmem_spec] * (1 + self.num_linear),
            out_specs=vmem_spec,
            compiler_params=pltpu.CompilerParams(vmem_limit_bytes=vmem_limit),
        )

        # rates = net(noise) is a pure function of parameters frozen at init:
        # compute EAGERLY so compile + kernel dispatch never land on the
        # sampling hot path.  (If weights are ever re-initialized, rebuild the
        # module — the cached rates do not invalidate.)
        out_pad = jax.block_until_ready(self._mlp(self._x_pad, *self._w_pads))
        self._rates = out_pad[0, : self.r_dim]                # (6,) Dirichlet concentrations

    def rates(self):
        return self._rates

    def forward(self, key, sample_size=1, min_clamp=False, max_clamp=False):
        rates = self._rates
        # TODO(synk): Dirichlet rsample + gammaln/digamma KL stay in plain JAX glue
        # (no Mosaic lowering for gamma-family transcendentals); the MLP is Pallas.
        samples = jax.random.dirichlet(key, rates, shape=(sample_size,)).astype(jnp.float32)
        if not isinstance(min_clamp, bool) and isinstance(min_clamp, (float, int)):
            samples = jnp.maximum(samples, jnp.float32(min_clamp))
        if not isinstance(max_clamp, bool) and isinstance(max_clamp, (float, int)):
            samples = jnp.minimum(samples, jnp.float32(max_clamp))
        r_kl = _dirichlet_kl(rates, self.pr).reshape((1,))
        return samples, r_kl


if __name__ == "__main__":
    root = jax.random.PRNGKey(0)
    k_init, k_sample = jax.random.split(root)

    model = GTRSubRateIndDeepDirEncoderPallas(h_dim=32, n_layers=2, key=k_init)

    samples, r_kl = model.forward(k_sample, sample_size=3)
    samples = jax.block_until_ready(samples)
    r_kl = jax.block_until_ready(r_kl)

    assert samples.shape == (3, 6), samples.shape
    assert r_kl.shape == (1,), r_kl.shape
    assert bool(jnp.all(jnp.isfinite(samples))) and bool(jnp.all(jnp.isfinite(r_kl)))
    # Dirichlet samples lie on the simplex and rates are strictly positive (Softplus).
    assert bool(jnp.allclose(jnp.sum(samples, axis=-1), 1.0, atol=1e-5))
    assert bool(jnp.all(model.rates() > 0.0))

    # Pure-JAX reference for the MLP (f32 end-to-end) must match the kernel.
    def _ref_rates(m):
        dims = [m.in_dim] + [m.h_dim] * (m.num_linear - 1) + [m.r_dim]
        h = m.noise
        for l in range(m.num_linear):
            fan_in, fan_out = dims[l], dims[l + 1]
            w = m._w_pads[l][:fan_in, :fan_out]
            b = m._w_pads[l][fan_in, :fan_out]
            z = h @ w + b
            h = jnp.maximum(z, 0.0) if l < m.num_linear - 1 else \
                jnp.where(z > 20.0, z, jnp.log1p(jnp.exp(jnp.minimum(z, 20.0))))
        return h
    assert bool(jnp.allclose(model.rates(), _ref_rates(model), rtol=1e-5, atol=1e-5))

    # Second forward reuses the eagerly-computed rates (no extra kernel dispatch).
    samples2, _ = model.forward(jax.random.PRNGKey(7), sample_size=2)
    jax.block_until_ready(samples2)
    assert samples2.shape == (2, 6)

    # Deeper variant exercises the hidden-layer ones-lane carry path.
    model3 = GTRSubRateIndDeepDirEncoderPallas(h_dim=32, n_layers=3, key=jax.random.PRNGKey(1))
    assert bool(jnp.allclose(model3.rates(), _ref_rates(model3), rtol=1e-5, atol=1e-5))

    print("KERNEL_OK")
</pallas_src>

<mosaic_0001>
module attributes {stable_mosaic.version = 11 : i64} {
  func.func @kernel(%arg0: memref<8x128xf32, #tpu.memory_space<vmem>>, %arg1: memref<128x128xf32, #tpu.memory_space<vmem>>, %arg2: memref<128x128xf32, #tpu.memory_space<vmem>>, %arg3: memref<8x128xf32, #tpu.memory_space<vmem>>) attributes {dimension_semantics = [], scalar_prefetch = 0 : i64, scratch_operands = 0 : i64, tpu.core_type = #tpu.core_type<tc>} {
    %c0 = arith.constant 0 : index
    %c0_0 = arith.constant 0 : index
    %0 = vector.load %arg0[%c0, %c0_0] : memref<8x128xf32, #tpu.memory_space<vmem>>, vector<8x128xf32>
    %c0_1 = arith.constant 0 : index
    %c0_2 = arith.constant 0 : index
    %1 = vector.load %arg1[%c0_1, %c0_2] : memref<128x128xf32, #tpu.memory_space<vmem>>, vector<128x128xf32>
    %cst = arith.constant dense<0.000000e+00> : vector<8x128xf32>
    %2 = tpu.matmul %0, %1, %cst {dimension_numbers = #tpu.dot_dimension_numbers<[1], [0], [0], [1], [0, 0, 1, 1], [], []>} : vector<8x128xf32>, vector<128x128xf32>, vector<8x128xf32> -> vector<8x128xf32>
    %cst_3 = arith.constant 0.000000e+00 : f32
    %3 = vector.broadcast %cst_3 : f32 to vector<8x128xf32>
    %4 = arith.maximumf %2, %3 : vector<8x128xf32>
    %c0_4 = arith.constant 0 : index
    %c0_5 = arith.constant 0 : index
    %5 = vector.load %arg2[%c0_4, %c0_5] : memref<128x128xf32, #tpu.memory_space<vmem>>, vector<128x128xf32>
    %cst_6 = arith.constant dense<0.000000e+00> : vector<8x128xf32>
    %6 = tpu.matmul %4, %5, %cst_6 {dimension_numbers = #tpu.dot_dimension_numbers<[1], [0], [0], [1], [0, 0, 1, 1], [], []>} : vector<8x128xf32>, vector<128x128xf32>, vector<8x128xf32> -> vector<8x128xf32>
    %cst_7 = arith.constant 2.000000e+01 : f32
    %7 = vector.broadcast %cst_7 : f32 to vector<8x128xf32>
    %8 = arith.cmpf ogt, %6, %7 : vector<8x128xf32>
    %cst_8 = arith.constant 2.000000e+01 : f32
    %9 = vector.broadcast %cst_8 : f32 to vector<8x128xf32>
    %10 = arith.minimumf %6, %9 : vector<8x128xf32>
    %11 = math.exp %10 : vector<8x128xf32>
    %12 = math.log1p %11 : vector<8x128xf32>
    %13 = arith.select %8, %6, %12 : vector<8x128xi1>, vector<8x128xf32>
    %c0_9 = arith.constant 0 : index
    %c0_10 = arith.constant 0 : index
    %14 = vector.load %arg3[%c0_9, %c0_10] : memref<8x128xf32, #tpu.memory_space<vmem>>, vector<8x128xf32>
    tpu.vector_store %arg3[%c0_9, %c0_10], %13 {strides = array<i32>} : memref<8x128xf32, #tpu.memory_space<vmem>>, vector<8x128xf32>,
    return
  }
}

</mosaic_0001>

<llo_original>
// kernel: tpu_custom_call.1
$region0: #{tpu_custom_call.1}
  #allocation0 [shape = 'u32[]', space=smem, size = 0x4, offset = 0x4, fixed_abs, tag = 'smem constant byte address 0x4 - core index']
  #allocation1 [shape = 'u32[72,128]{1,0:T(1,128)}', space=vmem, size = 0x9000, scoped, tag = 'internal scratch']
  %s0 = inlined_call_operand.hbm [shape: f32[8,128], index: 0, kind: input, shape index: {}]
  %s1 = inlined_call_operand.hbm [shape: f32[128,128], index: 1, kind: input, shape index: {}]
  %s2 = inlined_call_operand.hbm [shape: f32[128,128], index: 2, kind: input, shape index: {}]
  %s3 = inlined_call_operand.hbm [shape: f32[8,128], index: 3, kind: output, shape index: {}]
  %s4 = sld [smem:[#allocation0]]
  $region34: #{tpu_custom_call.1} parent=0
    _
  %s6 = ssub.s32 1, %s4
  %s7 = scalar_select 0, %s6, %s4
  $region1: #{tpu_custom_call.1} parent=0
    #allocation2 [shape = 'u8[4096]{0}', space=vmem, size = 0x1000, scoped, tag = 'input window, operand 0, single buffered']
    #allocation3 [shape = 's32[1]{0}', space=sflag, size = 0x4, scoped, tag = 'scoped memory for tpu_custom_call.1']
    #allocation4 [shape = 's32[1]{0}', space=sflag, size = 0x4, scoped, tag = 'scoped memory for tpu_custom_call.1']
    #allocation5 [shape = 'u8[65536]{0}', space=vmem, size = 0x10000, scoped, tag = 'input window, operand 1, single buffered']
    #allocation6 [shape = 's32[1]{0}', space=sflag, size = 0x4, scoped, tag = 'scoped memory for tpu_custom_call.1']
    #allocation7 [shape = 'u8[65536]{0}', space=vmem, size = 0x10000, scoped, tag = 'input window, operand 2, single buffered']
    #allocation8 [shape = 'u8[4096]{0}', space=vmem, size = 0x1000, scoped, tag = 'output window, operand 0, single buffered']
    %8 = vsyncpa [#allocation3], 0
    %9 = vsyncpa [#allocation6], 0
    %10 = vsyncpa [#allocation4], 0
    // Predicated region
    $region2: #{tpu_custom_call.1} parent=1 // pred_check
      _
    $region3: #{tpu_custom_call.1} parent=1 // pred_check_branch
      %12 = sbr.rel (0) target = $region5
    $region4: #{tpu_custom_call.1} parent=1 // pred_region
      %14 = vsyncadd [#allocation3], 0
      %s16 = sshll.u32 %s0, 4
      %s17 = int_to_ptr.hbm [resolvable:$true] %s16
      %s18 = sshll.u32 [#allocation2], 4
      %s19 = int_to_ptr.vmem [resolvable:$true] %s18
      %21 = dma.hbm_to_vmem [thread:$0]  %s17, 128, %s19, [#allocation3]
    $region5: #{tpu_custom_call.1} parent=1 // pred_fallthru
      _
    // Predicated region
    $region6: #{tpu_custom_call.1} parent=1 // pred_check
      _
    $region7: #{tpu_custom_call.1} parent=1 // pred_check_branch
      %23 = sbr.rel (0) target = $region9
    $region8: #{tpu_custom_call.1} parent=1 // pred_region
      %25 = vsyncadd [#allocation6], 0
      %s26 = sshll.u32 %s1, 4
      %s27 = int_to_ptr.hbm [resolvable:$true] %s26
      %s28 = sshll.u32 [#allocation5], 4
      %s29 = int_to_ptr.vmem [resolvable:$true] %s28
      %34 = dma.hbm_to_vmem [thread:$0]  %s27, 2048, %s29, [#allocation6], 128, 128, 8
    $region9: #{tpu_custom_call.1} parent=1 // pred_fallthru
      _
    // Predicated region
    $region10: #{tpu_custom_call.1} parent=1 // pred_check
      _
    $region11: #{tpu_custom_call.1} parent=1 // pred_check_branch
      %36 = sbr.rel (0) target = $region13
    $region12: #{tpu_custom_call.1} parent=1 // pred_region
      %38 = vsyncadd [#allocation6], 0
      %s39 = sshll.u32 %s2, 4
      %s40 = int_to_ptr.hbm [resolvable:$true] %s39
      %s41 = sshll.u32 [#allocation7], 4
      %s42 = int_to_ptr.vmem [resolvable:$true] %s41
      %47 = dma.hbm_to_vmem [thread:$0]  %s40, 2048, %s42, [#allocation6], 128, 128, 8
    $region13: #{tpu_custom_call.1} parent=1 // pred_fallthru
      _
    // Predicated region
    $region14: #{tpu_custom_call.1} parent=1 // pred_check
      _
    $region15: #{tpu_custom_call.1} parent=1 // pred_check_branch
      %49 = sbr.rel (0) target = $region17
    $region16: #{tpu_custom_call.1} parent=1 // pred_region
      %51 = dma.done [#allocation3], 128
    $region17: #{tpu_custom_call.1} parent=1 // pred_fallthru
      _
    // Predicated region
    $region18: #{tpu_custom_call.1} parent=1 // pred_check
      _
    $region19: #{tpu_custom_call.1} parent=1 // pred_check_branch
      %53 = sbr.rel (0) target = $region21
    $region20: #{tpu_custom_call.1} parent=1 // pred_region
      %55 = dma.done [#allocation6], 2048
    $region21: #{tpu_custom_call.1} parent=1 // pred_fallthru
      _
    // Predicated region
    $region22: #{tpu_custom_call.1} parent=1 // pred_check
      _
    $region23: #{tpu_custom_call.1} parent=1 // pred_check_branch
      %57 = sbr.rel (0) target = $region25
    $region24: #{tpu_custom_call.1} parent=1 // pred_region
      %59 = dma.done [#allocation6], 2048
    $region25: #{tpu_custom_call.1} parent=1 // pred_fallthru
      _
    %v60 = vld [vmem:[#allocation2] sm:$0xff]
    %v61 = vld [vmem:[#allocation5] sm:$0xff]
    %v62 = vld [vmem:[#allocation5 + $0x8] sm:$0xff]
    %v63 = vld [vmem:[#allocation5 + $0x10] sm:$0xff]
    %v64 = vld [vmem:[#allocation5 + $0x18] sm:$0xff]
    %v65 = vld [vmem:[#allocation5 + $0x20] sm:$0xff]
    %v66 = vld [vmem:[#allocation5 + $0x28] sm:$0xff]
    %v67 = vld [vmem:[#allocation5 + $0x30] sm:$0xff]
    %v68 = vld [vmem:[#allocation5 + $0x38] sm:$0xff]
    %v69 = vld [vmem:[#allocation5 + $0x40] sm:$0xff]
    %v70 = vld [vmem:[#allocation5 + $0x48] sm:$0xff]
    %v71 = vld [vmem:[#allocation5 + $0x50] sm:$0xff]
    %v72 = vld [vmem:[#allocation5 + $0x58] sm:$0xff]
    %v73 = vld [vmem:[#allocation5 + $0x60] sm:$0xff]
    %v74 = vld [vmem:[#allocation5 + $0x68] sm:$0xff]
    %v75 = vld [vmem:[#allocation5 + $0x70] sm:$0xff]
    %v76 = vld [vmem:[#allocation5 + $0x78] sm:$0xff]
    %77 = vmatpush.msra.mxu0 %v76
    %78 = vmatpush.msra.mxu0 %v75
    %79 = vmatpush.msra.mxu0 %v74
    %80 = vmatpush.msra.mxu0 %v73
    %81 = vmatpush.msra.mxu0 %v72
    %82 = vmatpush.msra.mxu0 %v71
    %83 = vmatpush.msra.mxu0 %v70
    %84 = vmatpush.msra.mxu0 %v69
    %85 = vmatpush.msra.mxu0 %v68
    %86 = vmatpush.msra.mxu0 %v67
    %87 = vmatpush.msra.mxu0 %v66
    %88 = vmatpush.msra.mxu0 %v65
    %89 = vmatpush.msra.mxu0 %v64
    %90 = vmatpush.msra.mxu0 %v63
    %91 = vmatpush.msra.mxu0 %v62
    %92 = vmatpush.msra.mxu0 %v61
    %93 = vmatmul.f32.gmra.mxu0 %v60
    %v94 = vpop.f32.mrf.mxu0
    %v95 = vadd.f32 0.0, %v94
    %96 = vdwg.mxu0
    %v97 = vmax.f32 %v95, 0.0
    %v98 = vld [vmem:[#allocation7] sm:$0xff]
    %v99 = vld [vmem:[#allocation7 + $0x8] sm:$0xff]
    %v100 = vld [vmem:[#allocation7 + $0x10] sm:$0xff]
    %v101 = vld [vmem:[#allocation7 + $0x18] sm:$0xff]
    %v102 = vld [vmem:[#allocation7 + $0x20] sm:$0xff]
    %v103 = vld [vmem:[#allocation7 + $0x28] sm:$0xff]
    %v104 = vld [vmem:[#allocation7 + $0x30] sm:$0xff]
    %v105 = vld [vmem:[#allocation7 + $0x38] sm:$0xff]
    %v106 = vld [vmem:[#allocation7 + $0x40] sm:$0xff]
    %v107 = vld [vmem:[#allocation7 + $0x48] sm:$0xff]
    %v108 = vld [vmem:[#allocation7 + $0x50] sm:$0xff]
    %v109 = vld [vmem:[#allocation7 + $0x58] sm:$0xff]
    %v110 = vld [vmem:[#allocation7 + $0x60] sm:$0xff]
    %v111 = vld [vmem:[#allocation7 + $0x68] sm:$0xff]
    %v112 = vld [vmem:[#allocation7 + $0x70] sm:$0xff]
    %v113 = vld [vmem:[#allocation7 + $0x78] sm:$0xff]
    %114 = vmatpush.msra.mxu0 %v113
    %115 = vmatpush.msra.mxu0 %v112
    %116 = vmatpush.msra.mxu0 %v111
    %117 = vmatpush.msra.mxu0 %v110
    %118 = vmatpush.msra.mxu0 %v109
    %119 = vmatpush.msra.mxu0 %v108
    %120 = vmatpush.msra.mxu0 %v107
    %121 = vmatpush.msra.mxu0 %v106
    %122 = vmatpush.msra.mxu0 %v105
    %123 = vmatpush.msra.mxu0 %v104
    %124 = vmatpush.msra.mxu0 %v103
    %125 = vmatpush.msra.mxu0 %v102
    %126 = vmatpush.msra.mxu0 %v101
    %127 = vmatpush.msra.mxu0 %v100
    %128 = vmatpush.msra.mxu0 %v99
    %129 = vmatpush.msra.mxu0 %v98
    %130 = vmatmul.f32.gmra.mxu0 %v97
    %v131 = vpop.f32.mrf.mxu0
    %v132 = vadd.f32 0.0, %v131
    %133 = vdwg.mxu0
    %vm134 = vcmp.gt.f32.partialorder %v132, 20.0
    %v135 = vmin.f32 %v132, 20.0
    %v136 = vmul.f32 %v135, 1.442695
    %v137 = vpow.pop %v136
    %v138 = vadd.f32 %v137, 1.0
    %v139 = vlog2.pop %v138
    %v140 = vmul.f32 %v139, 0.6931472
    %v141 = vmul.f32 -0.5, %v137
    %v142 = vadd.f32 %v141, 1.0
    %v143 = vmul.f32 %v142, %v137
    %v144 = vand.u32 2147483647, %v137
    %vm145 = vcmp.lt.f32.partialorder %v144, 0.0004427343
    %v146 = vsel %vm145, %v143, %v140
    %v147 = vsel %vm134, %v132, %v146
    %148 = vst [vmem:[#allocation8] sm:$0xff] %v147
    // Predicated region
    $region26: #{tpu_custom_call.1} parent=1 // pred_check
      _
    $region27: #{tpu_custom_call.1} parent=1 // pred_check_branch
      %150 = sbr.rel (0) target = $region29
    $region28: #{tpu_custom_call.1} parent=1 // pred_region
      %152 = vsyncadd [#allocation4], 0
      %s154 = sshll.u32 [#allocation8], 4
      %s155 = int_to_ptr.vmem [resolvable:$true] %s154
      %s156 = sshll.u32 %s3, 4
      %s157 = int_to_ptr.hbm [resolvable:$true] %s156
      %159 = dma.vmem_to_hbm [thread:$0]  %s155, 128, %s157, [#allocation4]
    $region29: #{tpu_custom_call.1} parent=1 // pred_fallthru
      _
    // Predicated region
    $region30: #{tpu_custom_call.1} parent=1 // pred_check
      _
    $region31: #{tpu_custom_call.1} parent=1 // pred_check_branch
      %161 = sbr.rel (0) target = $region33
    $region32: #{tpu_custom_call.1} parent=1 // pred_region
      %163 = dma.done [#allocation4], 128
    $region33: #{tpu_custom_call.1} parent=1 // pred_fallthru
      _
    %164 = vsyncpa [#allocation3], 1
    %165 = vsyncpa [#allocation6], 1
    %166 = vsyncpa [#allocation4], 1

</llo_original>
